<compile_context>
chip_gen: v7x
topology: tpu7x:2x2x1
jax: 0.10.0
libtpu: 0.0.40
codegen_flags: <defaults>
</compile_context>

<pallas_src>
import functools

import jax
import jax.numpy as jnp
from jax.experimental import pallas as pl
from jax.experimental.pallas import tpu as pltpu

# ---- synthetic Config.* dims (sum to 128 so the output row is lane-dense) ---
HIGHWAY_DIM = 32   # Config.sarn_seg_feat_highwaycode_dim
LENGTH_DIM = 16    # Config.sarn_seg_feat_lengthcode_dim
RADIAN_DIM = 16    # Config.sarn_seg_feat_radiancode_dim
LONLAT_DIM = 16    # Config.sarn_seg_feat_lonlatcode_dim
OUT_DIM = HIGHWAY_DIM + LENGTH_DIM + RADIAN_DIM + 4 * LONLAT_DIM  # = 128

# ---- synthetic vocab sizes (module __init__ args) ---------------------------
NWAYID_CODE = 64     # unused by forward
NSEGID_CODE = 64     # unused by forward
NHIGHWAY_CODE = 16
NLENGTH_CODE = 24
NRADIAN_CODE = 24
NLON_CODE = 32
NLAT_CODE = 32

_LANE = 128
_N_TABLE_SPLITS = 3                  # f32 table == hi + mid + lo (bf16 terms)
DEFAULT_TILE_N = 4096                # per review: amortise per-step overhead
_VMEM_LIMIT = 48 * 1024 * 1024       # <= ~48 MiB is safe even on v7x (64 MiB)


def _round_up(x, m):
    return ((x + m - 1) // m) * m


def _feat_embedding_kernel(idx_ref, tbl_ref, out_ref, *, k_pad, groups,
                           n_splits):
    """One tile: bf16 multi-hot (tile, k_pad) -> n_splits bf16 MXU passes."""
    # (tile, 7) pre-offset codes (invalid = -1), small exact ints -> bf16.
    idx = idx_ref[...].astype(jnp.bfloat16)
    tile = idx.shape[0]

    # Lane iota over the fused vocab axis: only (1, k_pad) (2 vregs); no need
    # to stage it in scratch.
    lane_ids = jax.lax.broadcasted_iota(jnp.int32, (1, k_pad), 1)
    lane_ids = lane_ids.astype(jnp.float32).astype(jnp.bfloat16)

    one = jnp.ones((), jnp.bfloat16)
    zero = jnp.zeros((), jnp.bfloat16)

    blocks = []
    for g, cols in enumerate(groups):                       # static unroll
        lanes_g = lane_ids[:, g * _LANE:(g + 1) * _LANE]    # (1, 128)
        if not cols:
            blocks.append(jnp.zeros((tile, _LANE), jnp.bfloat16))
            continue
        # Pre-offset codes of column c can only equal lanes inside that
        # column's own vocab range, so one compare per owning column OR-ed
        # together builds this 128-lane block of the multi-hot exactly.
        m = idx[:, cols[0]:cols[0] + 1] == lanes_g          # (tile, 128) bool
        for c in cols[1:]:
            m = m | (idx[:, c:c + 1] == lanes_g)
        blocks.append(jnp.where(m, one, zero))              # bf16 0/1
    multi_hot = blocks[0] if len(blocks) == 1 else jnp.concatenate(blocks,
                                                                   axis=1)

    # Three exact bf16 passes (hi/mid/lo) reconstruct the f32 table lookup.
    acc = jnp.dot(multi_hot, tbl_ref[0:k_pad, :],
                  preferred_element_type=jnp.float32)
    for p in range(1, n_splits):
        acc = acc + jnp.dot(multi_hot, tbl_ref[p * k_pad:(p + 1) * k_pad, :],
                            preferred_element_type=jnp.float32)
    out_ref[...] = acc


def _build_fused_table(tables, k_pad, out_dim):
    """Pack the (duplicated) tables block-diagonally into (k_pad, out_dim)."""
    fused = jnp.zeros((k_pad, out_dim), jnp.float32)
    r = c = 0
    for t in tables:
        v, d = t.shape
        fused = fused.at[r:r + v, c:c + d].set(t.astype(jnp.float32))
        r += v
        c += d
    return fused


def _split_bf16_exact(x, n_terms):
    """x (f32) == sum of n_terms bf16 arrays (to ~2**-(8*n_terms) relative)."""
    parts = []
    resid = x
    for _ in range(n_terms):
        p = resid.astype(jnp.bfloat16)
        parts.append(p)
        resid = resid - p.astype(jnp.float32)
    return parts


def feat_embedding(inputs, emb_highway, emb_length, emb_radian, emb_lon,
                   emb_lat, *, tile_n=DEFAULT_TILE_N):
    """Pallas equivalent of FeatEmbedding.forward."""
    n = inputs.shape[0]
    # Order of use in forward(): columns 2..8 of `inputs`.
    tables = (emb_highway, emb_length, emb_radian, emb_lon, emb_lat,
              emb_lon, emb_lat)
    dims = tuple(int(t.shape[1]) for t in tables)
    vocabs = tuple(int(t.shape[0]) for t in tables)
    out_dim = sum(dims)                       # 128 (lane-dense output)
    k_total = sum(vocabs)                     # 192
    k_pad = _round_up(k_total, _LANE)         # 256

    offsets = []
    acc = 0
    for v in vocabs:
        offsets.append(acc)
        acc += v
    offsets = tuple(offsets)

    # Which feature columns can match inside each 128-lane block of the fused
    # vocab axis (static -> unrolled compares in the kernel).
    groups = []
    for g in range(k_pad // _LANE):
        lo, hi = g * _LANE, (g + 1) * _LANE
        groups.append(tuple(c for c, (off, v) in enumerate(zip(offsets, vocabs))
                            if off < hi and off + v > lo))
    groups = tuple(groups)

    # Fused block-diagonal table as an exact 3-term bf16 decomposition,
    # stacked to (3 * k_pad, out_dim) so a single VMEM-resident input carries
    # all three MXU passes.
    fused = _build_fused_table(tables, k_pad, out_dim)
    tbl = jnp.concatenate(_split_bf16_exact(fused, _N_TABLE_SPLITS), axis=0)

    # Pre-offset (and validity-mask) the 7 used index columns in the wrapper:
    # one fused XLA pass instead of per-column adds on (tile, 1) slices inside
    # the kernel.  Invalid codes -> -1, which matches no lane -> zero block.
    idx = inputs[:, 2:9].astype(jnp.int32)                        # (n, 7)
    vocab_arr = jnp.asarray(vocabs, jnp.int32)[None, :]
    off_arr = jnp.asarray(offsets, jnp.int32)[None, :]
    valid = (idx >= 0) & (idx < vocab_arr)
    idx_pre = jnp.where(valid, idx + off_arr, -1).astype(jnp.float32)

    # Adaptive tile: minimise padding waste (at most ~8 rows per step) and
    # keep >=2 grid steps when possible so the v7x megacore has work to split.
    n8 = _round_up(max(n, 1), 8)
    steps = max(pl.cdiv(n8, max(int(tile_n), 8)), 1)
    if steps == 1 and n8 >= 16:
        steps = 2
    tile = _round_up(pl.cdiv(n8, steps), 8)
    n_pad = tile * steps
    if n_pad != n:
        idx_pre = jnp.pad(idx_pre, ((0, n_pad - n), (0, 0)),
                          constant_values=-1.0)

    kernel = functools.partial(_feat_embedding_kernel, k_pad=k_pad,
                               groups=groups, n_splits=_N_TABLE_SPLITS)

    out = pl.pallas_call(
        kernel,
        out_shape=jax.ShapeDtypeStruct((n_pad, out_dim), jnp.float32),
        grid=(steps,),
        in_specs=[
            pl.BlockSpec((tile, idx_pre.shape[1]), lambda i: (i, 0)),
            pl.BlockSpec((_N_TABLE_SPLITS * k_pad, out_dim),
                         lambda i: (0, 0)),                 # resident table
        ],
        out_specs=pl.BlockSpec((tile, out_dim), lambda i: (i, 0)),
        compiler_params=pltpu.CompilerParams(
            # TODO(synk): verify on a v7x profile that "parallel" really
            # shards this grid across both TensorCores; if not, switch to
            # pltpu.CORE_PARALLEL.
            dimension_semantics=("parallel",),
            vmem_limit_bytes=_VMEM_LIMIT),
    )(idx_pre, tbl)
    return out[:n]


def feat_embedding_ref(inputs, hw, ln, rad, lon, lat):
    return jnp.concatenate(
        [hw[inputs[:, 2]], ln[inputs[:, 3]], rad[inputs[:, 4]],
         lon[inputs[:, 5]], lat[inputs[:, 6]], lon[inputs[:, 7]],
         lat[inputs[:, 8]]], axis=1)


if __name__ == "__main__":
    key = jax.random.PRNGKey(0)
    k_hw, k_ln, k_rad, k_lon, k_lat, k_i1, k_i2 = jax.random.split(key, 7)

    # deterministic "nn.Embedding" weights (N(0,1), like torch default init)
    emb_highway = jax.random.normal(k_hw, (NHIGHWAY_CODE, HIGHWAY_DIM), jnp.float32)
    emb_length = jax.random.normal(k_ln, (NLENGTH_CODE, LENGTH_DIM), jnp.float32)
    emb_radian = jax.random.normal(k_rad, (NRADIAN_CODE, RADIAN_DIM), jnp.float32)
    emb_lon = jax.random.normal(k_lon, (NLON_CODE, LONLAT_DIM), jnp.float32)
    emb_lat = jax.random.normal(k_lat, (NLAT_CODE, LONLAT_DIM), jnp.float32)

    vocab_per_col = jnp.array(
        [NWAYID_CODE, NSEGID_CODE, NHIGHWAY_CODE, NLENGTH_CODE, NRADIAN_CODE,
         NLON_CODE, NLAT_CODE, NLON_CODE, NLAT_CODE], dtype=jnp.int32)

    def make_inputs(k, n):
        raw = jax.random.randint(k, (n, 9), 0, 1 << 16, dtype=jnp.int32)
        return raw % vocab_per_col[None, :]

    # Case 1: tiny batch (single grid step).
    inputs_small = make_inputs(k_i1, 8)
    out_small = jax.block_until_ready(
        feat_embedding(inputs_small, emb_highway, emb_length, emb_radian,
                       emb_lon, emb_lat))
    ref_small = feat_embedding_ref(inputs_small, emb_highway, emb_length,
                                   emb_radian, emb_lon, emb_lat)
    assert out_small.shape == (8, OUT_DIM) and out_small.dtype == jnp.float32
    assert jnp.allclose(out_small, ref_small, atol=1e-5, rtol=1e-5)

    # Case 2: N not a multiple of the tile -> multi-step pipelined grid plus
    # the adaptive-tile pad/slice path.
    inputs_med = make_inputs(k_i2, 200)
    out_med = jax.block_until_ready(
        feat_embedding(inputs_med, emb_highway, emb_length, emb_radian,
                       emb_lon, emb_lat, tile_n=64))
    ref_med = feat_embedding_ref(inputs_med, emb_highway, emb_length,
                                 emb_radian, emb_lon, emb_lat)
    assert out_med.shape == (200, OUT_DIM)
    assert jnp.allclose(out_med, ref_med, atol=1e-5, rtol=1e-5)

    print("KERNEL_OK")
</pallas_src>

<mosaic_0001>
module attributes {stable_mosaic.version = 11 : i64} {
  func.func @_feat_embedding_kernel(%arg0: i32, %arg1: memref<8x7xf32, #tpu.memory_space<vmem>>, %arg2: memref<768x128xbf16, #tpu.memory_space<vmem>>, %arg3: memref<8x128xf32, #tpu.memory_space<vmem>>) attributes {dimension_semantics = [#tpu.dimension_semantics<parallel>], iteration_bounds = array<i64: 1>, scalar_prefetch = 0 : i64, scratch_operands = 0 : i64, tpu.core_type = #tpu.core_type<tc>, window_params = [{transform_indices = @transform_0, window_bounds = array<i64: 8, 7>}, {pipeline_mode = #tpu.pipeline_mode<synchronous>, transform_indices = @transform_1, window_bounds = array<i64: 768, 128>}, {transform_indices = @transform_2, window_bounds = array<i64: 8, 128>}]} {
    %c0 = arith.constant 0 : index
    %c0_0 = arith.constant 0 : index
    %0 = vector.load %arg1[%c0, %c0_0] : memref<8x7xf32, #tpu.memory_space<vmem>>, vector<8x7xf32>
    %1 = arith.truncf %0 : vector<8x7xf32> to vector<8x7xbf16>
    %2 = tpu.iota {dimensions = array<i32: 1>} : vector<1x256xi32>
    %3 = arith.sitofp %2 : vector<1x256xi32> to vector<1x256xf32>
    %4 = arith.truncf %3 : vector<1x256xf32> to vector<1x256xbf16>
    %5 = vector.extract_strided_slice %4 {offsets = [0, 0], sizes = [1, 128], strides = [1, 1]} : vector<1x256xbf16> to vector<1x128xbf16>
    %6 = vector.extract_strided_slice %1 {offsets = [0, 0], sizes = [8, 1], strides = [1, 1]} : vector<8x7xbf16> to vector<8x1xbf16>
    %7 = vector.broadcast %6 : vector<8x1xbf16> to vector<8x128xbf16>
    %8 = vector.broadcast %5 : vector<1x128xbf16> to vector<8x128xbf16>
    %9 = arith.cmpf oeq, %7, %8 : vector<8x128xbf16>
    %10 = vector.extract_strided_slice %1 {offsets = [0, 1], sizes = [8, 1], strides = [1, 1]} : vector<8x7xbf16> to vector<8x1xbf16>
    %11 = vector.broadcast %10 : vector<8x1xbf16> to vector<8x128xbf16>
    %12 = vector.broadcast %5 : vector<1x128xbf16> to vector<8x128xbf16>
    %13 = arith.cmpf oeq, %11, %12 : vector<8x128xbf16>
    %14 = arith.ori %9, %13 : vector<8x128xi1>
    %15 = vector.extract_strided_slice %1 {offsets = [0, 2], sizes = [8, 1], strides = [1, 1]} : vector<8x7xbf16> to vector<8x1xbf16>
    %16 = vector.broadcast %15 : vector<8x1xbf16> to vector<8x128xbf16>
    %17 = vector.broadcast %5 : vector<1x128xbf16> to vector<8x128xbf16>
    %18 = arith.cmpf oeq, %16, %17 : vector<8x128xbf16>
    %19 = arith.ori %14, %18 : vector<8x128xi1>
    %20 = vector.extract_strided_slice %1 {offsets = [0, 3], sizes = [8, 1], strides = [1, 1]} : vector<8x7xbf16> to vector<8x1xbf16>
    %21 = vector.broadcast %20 : vector<8x1xbf16> to vector<8x128xbf16>
    %22 = vector.broadcast %5 : vector<1x128xbf16> to vector<8x128xbf16>
    %23 = arith.cmpf oeq, %21, %22 : vector<8x128xbf16>
    %24 = arith.ori %19, %23 : vector<8x128xi1>
    %25 = vector.extract_strided_slice %1 {offsets = [0, 4], sizes = [8, 1], strides = [1, 1]} : vector<8x7xbf16> to vector<8x1xbf16>
    %26 = vector.broadcast %25 : vector<8x1xbf16> to vector<8x128xbf16>
    %27 = vector.broadcast %5 : vector<1x128xbf16> to vector<8x128xbf16>
    %28 = arith.cmpf oeq, %26, %27 : vector<8x128xbf16>
    %29 = arith.ori %24, %28 : vector<8x128xi1>
    %cst = arith.constant 1.000000e+00 : bf16
    %cst_1 = arith.constant 0.000000e+00 : bf16
    %30 = vector.broadcast %cst : bf16 to vector<8x128xbf16>
    %31 = vector.broadcast %cst_1 : bf16 to vector<8x128xbf16>
    %32 = arith.select %29, %30, %31 : vector<8x128xi1>, vector<8x128xbf16>
    %33 = vector.extract_strided_slice %4 {offsets = [0, 128], sizes = [1, 128], strides = [1, 1]} : vector<1x256xbf16> to vector<1x128xbf16>
    %34 = vector.extract_strided_slice %1 {offsets = [0, 5], sizes = [8, 1], strides = [1, 1]} : vector<8x7xbf16> to vector<8x1xbf16>
    %35 = vector.broadcast %34 : vector<8x1xbf16> to vector<8x128xbf16>
    %36 = vector.broadcast %33 : vector<1x128xbf16> to vector<8x128xbf16>
    %37 = arith.cmpf oeq, %35, %36 : vector<8x128xbf16>
    %38 = vector.extract_strided_slice %1 {offsets = [0, 6], sizes = [8, 1], strides = [1, 1]} : vector<8x7xbf16> to vector<8x1xbf16>
    %39 = vector.broadcast %38 : vector<8x1xbf16> to vector<8x128xbf16>
    %40 = vector.broadcast %33 : vector<1x128xbf16> to vector<8x128xbf16>
    %41 = arith.cmpf oeq, %39, %40 : vector<8x128xbf16>
    %42 = arith.ori %37, %41 : vector<8x128xi1>
    %cst_2 = arith.constant 1.000000e+00 : bf16
    %cst_3 = arith.constant 0.000000e+00 : bf16
    %43 = vector.broadcast %cst_2 : bf16 to vector<8x128xbf16>
    %44 = vector.broadcast %cst_3 : bf16 to vector<8x128xbf16>
    %45 = arith.select %42, %43, %44 : vector<8x128xi1>, vector<8x128xbf16>
    %46 = tpu.concatenate %32, %45 in 1 : vector<8x128xbf16>, vector<8x128xbf16> -> vector<8x256xbf16>
    %c0_4 = arith.constant 0 : index
    %c0_5 = arith.constant 0 : index
    %47 = vector.load %arg2[%c0_4, %c0_5] : memref<768x128xbf16, #tpu.memory_space<vmem>>, vector<256x128xbf16>
    %cst_6 = arith.constant dense<0.000000e+00> : vector<8x128xf32>
    %48 = tpu.matmul %46, %47, %cst_6 {dimension_numbers = #tpu.dot_dimension_numbers<[1], [0], [0], [1], [0, 0, 1, 1], [], []>} : vector<8x256xbf16>, vector<256x128xbf16>, vector<8x128xf32> -> vector<8x128xf32>
    %c256 = arith.constant 256 : index
    %c0_7 = arith.constant 0 : index
    %49 = vector.load %arg2[%c256, %c0_7] : memref<768x128xbf16, #tpu.memory_space<vmem>>, vector<256x128xbf16>
    %cst_8 = arith.constant dense<0.000000e+00> : vector<8x128xf32>
    %50 = tpu.matmul %46, %49, %cst_8 {dimension_numbers = #tpu.dot_dimension_numbers<[1], [0], [0], [1], [0, 0, 1, 1], [], []>} : vector<8x256xbf16>, vector<256x128xbf16>, vector<8x128xf32> -> vector<8x128xf32>
    %51 = arith.addf %48, %50 : vector<8x128xf32>
    %c512 = arith.constant 512 : index
    %c0_9 = arith.constant 0 : index
    %52 = vector.load %arg2[%c512, %c0_9] : memref<768x128xbf16, #tpu.memory_space<vmem>>, vector<256x128xbf16>
    %cst_10 = arith.constant dense<0.000000e+00> : vector<8x128xf32>
    %53 = tpu.matmul %46, %52, %cst_10 {dimension_numbers = #tpu.dot_dimension_numbers<[1], [0], [0], [1], [0, 0, 1, 1], [], []>} : vector<8x256xbf16>, vector<256x128xbf16>, vector<8x128xf32> -> vector<8x128xf32>
    %54 = arith.addf %51, %53 : vector<8x128xf32>
    %c0_11 = arith.constant 0 : index
    %c0_12 = arith.constant 0 : index
    %55 = vector.load %arg3[%c0_11, %c0_12] : memref<8x128xf32, #tpu.memory_space<vmem>>, vector<8x128xf32>
    tpu.vector_store %arg3[%c0_11, %c0_12], %54 {strides = array<i32>} : memref<8x128xf32, #tpu.memory_space<vmem>>, vector<8x128xf32>,
    return
  }
  func.func @transform_0(%arg0: i32) -> (i32, i32) {
    %c0_i32 = arith.constant 0 : i32
    %c0_i32_0 = arith.constant 0 : i32
    return %arg0, %c0_i32 : i32, i32
  }
  func.func @transform_1(%arg0: i32) -> (i32, i32) {
    %c0_i32 = arith.constant 0 : i32
    %c0_i32_0 = arith.constant 0 : i32
    %c0_i32_1 = arith.constant 0 : i32
    return %c0_i32, %c0_i32_0 : i32, i32
  }
  func.func @transform_2(%arg0: i32) -> (i32, i32) {
    %c0_i32 = arith.constant 0 : i32
    %c0_i32_0 = arith.constant 0 : i32
    return %arg0, %c0_i32 : i32, i32
  }
}

</mosaic_0001>

<llo_original>
// kernel: tpu_custom_call.1
$region0: #{tpu_custom_call.1}
  #allocation0 [shape = 'u32[]', space=smem, size = 0x4, offset = 0x4, fixed_abs, tag = 'smem constant byte address 0x4 - core index']
  #allocation1 [shape = 'u32[144,128]{1,0:T(1,128)}', space=vmem, size = 0x12000, scoped, tag = 'internal scratch']
  %s0 = inlined_call_operand.hbm [shape: f32[8,7], index: 0, kind: input, shape index: {}]
  %s1 = inlined_call_operand.hbm [shape: bf16[768,128], index: 1, kind: input, shape index: {}]
  %s2 = inlined_call_operand.hbm [shape: f32[8,128], index: 2, kind: output, shape index: {}]
  %s3 = sld [smem:[#allocation0]]
  $region26: #{tpu_custom_call.1} parent=0
    _
  %s5 = ssub.s32 1, %s3
  %s6 = scalar_select 0, %s5, %s3
  $region1: #{tpu_custom_call.1} parent=0
    #allocation2 [shape = 'u8[4096]{0}', space=vmem, size = 0x1000, scoped, tag = 'input window, operand 0, single buffered']
    #allocation3 [shape = 's32[1]{0}', space=sflag, size = 0x4, scoped, tag = 'scoped memory for tpu_custom_call.1']
    #allocation4 [shape = 's32[1]{0}', space=sflag, size = 0x4, scoped, tag = 'scoped memory for tpu_custom_call.1']
    #allocation5 [shape = 'u8[196608]{0}', space=vmem, size = 0x30000, scoped, tag = 'input window, operand 1, single buffered']
    #allocation6 [shape = 's32[1]{0}', space=sflag, size = 0x4, scoped, tag = 'scoped memory for tpu_custom_call.1']
    #allocation7 [shape = 'u8[4096]{0}', space=vmem, size = 0x1000, scoped, tag = 'output window, operand 0, single buffered']
    %7 = vsyncpa [#allocation3], 0
    %8 = vsyncpa [#allocation6], 0
    %9 = vsyncpa [#allocation4], 0
    // Predicated region
    $region2: #{tpu_custom_call.1} parent=1 // pred_check
      _
    $region3: #{tpu_custom_call.1} parent=1 // pred_check_branch
      %11 = sbr.rel (0) target = $region5
    $region4: #{tpu_custom_call.1} parent=1 // pred_region
      %s13 = ssub.s32 128, 128
      %14 = vsyncadd [#allocation3], %s13
      %s16 = sshll.u32 [#allocation2], 4
      %s17 = int_to_ptr.vmem [resolvable:$true] %s16
      %19 = dma.hbm_to_vmem [thread:$0]  %s0, 128, %s17, [#allocation3]
    $region5: #{tpu_custom_call.1} parent=1 // pred_fallthru
      _
    // Predicated region
    $region6: #{tpu_custom_call.1} parent=1 // pred_check
      _
    $region7: #{tpu_custom_call.1} parent=1 // pred_check_branch
      %21 = sbr.rel (0) target = $region9
    $region8: #{tpu_custom_call.1} parent=1 // pred_region
      %s23 = ssub.s32 6144, 6144
      %24 = vsyncadd [#allocation6], %s23
      %s25 = sshll.u32 [#allocation5], 4
      %s26 = int_to_ptr.vmem [resolvable:$true] %s25
      %31 = dma.hbm_to_vmem [thread:$0]  %s1, 6144, %s26, [#allocation6], 64, 64, 4
    $region9: #{tpu_custom_call.1} parent=1 // pred_fallthru
      _
    // Predicated region
    $region10: #{tpu_custom_call.1} parent=1 // pred_check
      _
    $region11: #{tpu_custom_call.1} parent=1 // pred_check_branch
      %33 = sbr.rel (0) target = $region13
    $region12: #{tpu_custom_call.1} parent=1 // pred_region
      %34 = dma.done [#allocation3], 128
    $region13: #{tpu_custom_call.1} parent=1 // pred_fallthru
      _
    // Predicated region
    $region14: #{tpu_custom_call.1} parent=1 // pred_check
      _
    $region15: #{tpu_custom_call.1} parent=1 // pred_check_branch
      %36 = sbr.rel (0) target = $region17
    $region16: #{tpu_custom_call.1} parent=1 // pred_region
      %37 = dma.done [#allocation6], 6144
    $region17: #{tpu_custom_call.1} parent=1 // pred_fallthru
      _
    %v40 = vld [vmem:[#allocation2] sm:$0xff]
    %v41 = vpack.c.bf16 %v40, %v40
    %v42 = vlaneseq
    %v43 = vand.u32 %v42, 127
    %v44 = vadd.s32 %v43, 128
    %v45 = vcvt.s32.f32 %v43
    %v46 = vcvt.s32.f32 %v44
    %v47 = vpack.c.bf16 %v45, %v45
    %v48 = vpack.c.bf16 %v46, %v46
    %50 = vset.pattern.permute.xlu0 0
    %51 = vperm.xlu0 %50, %v41
    %v52 = vpop.permute.xlu0 %51
    %vm54 = vcmp.eq.bf16.partialorder %v52, %v47
    %55 = vset.pattern.permute.xlu0 1
    %56 = vperm.xlu0 %55, %v41
    %v57 = vpop.permute.xlu0 %56
    %vm59 = vcmp.eq.bf16.partialorder %v57, %v47
    %vm60 = vmor %vm54, %vm59
    %61 = vset.pattern.permute.xlu0 2
    %62 = vperm.xlu0 %61, %v41
    %v63 = vpop.permute.xlu0 %62
    %vm65 = vcmp.eq.bf16.partialorder %v63, %v47
    %vm66 = vmor %vm60, %vm65
    %67 = vset.pattern.permute.xlu0 3
    %68 = vperm.xlu0 %67, %v41
    %v69 = vpop.permute.xlu0 %68
    %vm71 = vcmp.eq.bf16.partialorder %v69, %v47
    %vm72 = vmor %vm66, %vm71
    %73 = vset.pattern.permute.xlu0 4
    %74 = vperm.xlu0 %73, %v41
    %v75 = vpop.permute.xlu0 %74
    %vm77 = vcmp.eq.bf16.partialorder %v75, %v47
    %vm78 = vmor %vm72, %vm77
    %v79 = vsel %vm78, 1065369472, 0
    %80 = vset.pattern.permute.xlu0 5
    %81 = vperm.xlu0 %80, %v41
    %v82 = vpop.permute.xlu0 %81
    %vm84 = vcmp.eq.bf16.partialorder %v82, %v48
    %85 = vset.pattern.permute.xlu0 6
    %86 = vperm.xlu0 %85, %v41
    %v87 = vpop.permute.xlu0 %86
    %vm89 = vcmp.eq.bf16.partialorder %v87, %v48
    %vm90 = vmor %vm84, %vm89
    %v91 = vsel %vm90, 1065369472, 0
    %v92 = vld [vmem:[#allocation5] sm:$0xf]
    %v93 = vld [vmem:[#allocation5 + $0x4] sm:$0xf]
    %v94 = vld [vmem:[#allocation5 + $0x8] sm:$0xf]
    %v95 = vld [vmem:[#allocation5 + $0xc] sm:$0xf]
    %v96 = vld [vmem:[#allocation5 + $0x10] sm:$0xf]
    %v97 = vld [vmem:[#allocation5 + $0x14] sm:$0xf]
    %v98 = vld [vmem:[#allocation5 + $0x18] sm:$0xf]
    %v99 = vld [vmem:[#allocation5 + $0x1c] sm:$0xf]
    %v100 = vld [vmem:[#allocation5 + $0x20] sm:$0xf]
    %v101 = vld [vmem:[#allocation5 + $0x24] sm:$0xf]
    %v102 = vld [vmem:[#allocation5 + $0x28] sm:$0xf]
    %v103 = vld [vmem:[#allocation5 + $0x2c] sm:$0xf]
    %v104 = vld [vmem:[#allocation5 + $0x30] sm:$0xf]
    %v105 = vld [vmem:[#allocation5 + $0x34] sm:$0xf]
    %v106 = vld [vmem:[#allocation5 + $0x38] sm:$0xf]
    %v107 = vld [vmem:[#allocation5 + $0x3c] sm:$0xf]
    %v108 = vld [vmem:[#allocation5 + $0x40] sm:$0xf]
    %v109 = vld [vmem:[#allocation5 + $0x44] sm:$0xf]
    %v110 = vld [vmem:[#allocation5 + $0x48] sm:$0xf]
    %v111 = vld [vmem:[#allocation5 + $0x4c] sm:$0xf]
    %v112 = vld [vmem:[#allocation5 + $0x50] sm:$0xf]
    %v113 = vld [vmem:[#allocation5 + $0x54] sm:$0xf]
    %v114 = vld [vmem:[#allocation5 + $0x58] sm:$0xf]
    %v115 = vld [vmem:[#allocation5 + $0x5c] sm:$0xf]
    %v116 = vld [vmem:[#allocation5 + $0x60] sm:$0xf]
    %v117 = vld [vmem:[#allocation5 + $0x64] sm:$0xf]
    %v118 = vld [vmem:[#allocation5 + $0x68] sm:$0xf]
    %v119 = vld [vmem:[#allocation5 + $0x6c] sm:$0xf]
    %v120 = vld [vmem:[#allocation5 + $0x70] sm:$0xf]
    %v121 = vld [vmem:[#allocation5 + $0x74] sm:$0xf]
    %v122 = vld [vmem:[#allocation5 + $0x78] sm:$0xf]
    %v123 = vld [vmem:[#allocation5 + $0x7c] sm:$0xf]
    %v124 = vld [vmem:[#allocation5 + $0x80] sm:$0xf]
    %v125 = vld [vmem:[#allocation5 + $0x84] sm:$0xf]
    %v126 = vld [vmem:[#allocation5 + $0x88] sm:$0xf]
    %v127 = vld [vmem:[#allocation5 + $0x8c] sm:$0xf]
    %v128 = vld [vmem:[#allocation5 + $0x90] sm:$0xf]
    %v129 = vld [vmem:[#allocation5 + $0x94] sm:$0xf]
    %v130 = vld [vmem:[#allocation5 + $0x98] sm:$0xf]
    %v131 = vld [vmem:[#allocation5 + $0x9c] sm:$0xf]
    %v132 = vld [vmem:[#allocation5 + $0xa0] sm:$0xf]
    %v133 = vld [vmem:[#allocation5 + $0xa4] sm:$0xf]
    %v134 = vld [vmem:[#allocation5 + $0xa8] sm:$0xf]
    %v135 = vld [vmem:[#allocation5 + $0xac] sm:$0xf]
    %v136 = vld [vmem:[#allocation5 + $0xb0] sm:$0xf]
    %v137 = vld [vmem:[#allocation5 + $0xb4] sm:$0xf]
    %v138 = vld [vmem:[#allocation5 + $0xb8] sm:$0xf]
    %v139 = vld [vmem:[#allocation5 + $0xbc] sm:$0xf]
    %v140 = vld [vmem:[#allocation5 + $0xc0] sm:$0xf]
    %v141 = vld [vmem:[#allocation5 + $0xc4] sm:$0xf]
    %v142 = vld [vmem:[#allocation5 + $0xc8] sm:$0xf]
    %v143 = vld [vmem:[#allocation5 + $0xcc] sm:$0xf]
    %v144 = vld [vmem:[#allocation5 + $0xd0] sm:$0xf]
    %v145 = vld [vmem:[#allocation5 + $0xd4] sm:$0xf]
    %v146 = vld [vmem:[#allocation5 + $0xd8] sm:$0xf]
    %v147 = vld [vmem:[#allocation5 + $0xdc] sm:$0xf]
    %v148 = vld [vmem:[#allocation5 + $0xe0] sm:$0xf]
    %v149 = vld [vmem:[#allocation5 + $0xe4] sm:$0xf]
    %v150 = vld [vmem:[#allocation5 + $0xe8] sm:$0xf]
    %v151 = vld [vmem:[#allocation5 + $0xec] sm:$0xf]
    %v152 = vld [vmem:[#allocation5 + $0xf0] sm:$0xf]
    %v153 = vld [vmem:[#allocation5 + $0xf4] sm:$0xf]
    %v154 = vld [vmem:[#allocation5 + $0xf8] sm:$0xf]
    %v155 = vld [vmem:[#allocation5 + $0xfc] sm:$0xf]
    %v188 = vunpack.c.l.b16 %v124
    %v189 = vunpack.c.l.b16 %v125
    %v190 = vunpack.c.l.b16 %v126
    %v191 = vunpack.c.l.b16 %v127
    %v192 = vunpack.c.l.b16 %v128
    %v193 = vunpack.c.l.b16 %v129
    %v194 = vunpack.c.l.b16 %v130
    %v195 = vunpack.c.l.b16 %v131
    %v196 = vunpack.c.l.b16 %v132
    %v197 = vunpack.c.l.b16 %v133
    %v198 = vunpack.c.l.b16 %v134
    %v199 = vunpack.c.l.b16 %v135
    %v200 = vunpack.c.l.b16 %v136
    %v201 = vunpack.c.l.b16 %v137
    %v202 = vunpack.c.l.b16 %v138
    %v203 = vunpack.c.l.b16 %v139
    %v204 = vunpack.c.l.b16 %v140
    %v205 = vunpack.c.l.b16 %v141
    %v206 = vunpack.c.l.b16 %v142
    %v207 = vunpack.c.l.b16 %v143
    %v208 = vunpack.c.l.b16 %v144
    %v209 = vunpack.c.l.b16 %v145
    %v210 = vunpack.c.l.b16 %v146
    %v211 = vunpack.c.l.b16 %v147
    %v212 = vunpack.c.l.b16 %v148
    %v213 = vunpack.c.l.b16 %v149
    %v214 = vunpack.c.l.b16 %v150
    %v215 = vunpack.c.l.b16 %v151
    %v216 = vunpack.c.l.b16 %v152
    %v217 = vunpack.c.l.b16 %v153
    %v218 = vunpack.c.l.b16 %v154
    %v219 = vunpack.c.l.b16 %v155
    %v220 = vpack.c.b16 %v189, %v188
    %v221 = vpack.c.b16 %v191, %v190
    %v222 = vpack.c.b16 %v193, %v192
    %v223 = vpack.c.b16 %v195, %v194
    %v224 = vpack.c.b16 %v197, %v196
    %v225 = vpack.c.b16 %v199, %v198
    %v226 = vpack.c.b16 %v201, %v200
    %v227 = vpack.c.b16 %v203, %v202
    %v228 = vpack.c.b16 %v205, %v204
    %v229 = vpack.c.b16 %v207, %v206
    %v230 = vpack.c.b16 %v209, %v208
    %v231 = vpack.c.b16 %v211, %v210
    %v232 = vpack.c.b16 %v213, %v212
    %v233 = vpack.c.b16 %v215, %v214
    %v234 = vpack.c.b16 %v217, %v216
    %v235 = vpack.c.b16 %v219, %v218
    %252 = vmatprep.subr.bf16.mxu0 0
    %253 = vmatpush1.bf16.msra.mxu0 %v220
    %254 = vmatprep.subr.bf16.mxu0 0
    %255 = vmatpush1.bf16.msra.mxu0 %v221
    %256 = vmatprep.subr.bf16.mxu0 0
    %257 = vmatpush1.bf16.msra.mxu0 %v222
    %258 = vmatprep.subr.bf16.mxu0 0
    %259 = vmatpush1.bf16.msra.mxu0 %v223
    %260 = vmatprep.subr.bf16.mxu0 0
    %261 = vmatpush1.bf16.msra.mxu0 %v224
    %262 = vmatprep.subr.bf16.mxu0 0
    %263 = vmatpush1.bf16.msra.mxu0 %v225
    %264 = vmatprep.subr.bf16.mxu0 0
    %265 = vmatpush1.bf16.msra.mxu0 %v226
    %266 = vmatprep.subr.bf16.mxu0 0
    %267 = vmatpush1.bf16.msra.mxu0 %v227
    %268 = vmatprep.subr.bf16.mxu0 0
    %269 = vmatpush1.bf16.msra.mxu0 %v228
    %270 = vmatprep.subr.bf16.mxu0 0
    %271 = vmatpush1.bf16.msra.mxu0 %v229
    %272 = vmatprep.subr.bf16.mxu0 0
    %273 = vmatpush1.bf16.msra.mxu0 %v230
    %274 = vmatprep.subr.bf16.mxu0 0
    %275 = vmatpush1.bf16.msra.mxu0 %v231
    %276 = vmatprep.subr.bf16.mxu0 0
    %277 = vmatpush1.bf16.msra.mxu0 %v232
    %278 = vmatprep.subr.bf16.mxu0 0
    %279 = vmatpush1.bf16.msra.mxu0 %v233
    %280 = vmatprep.subr.bf16.mxu0 0
    %281 = vmatpush1.bf16.msra.mxu0 %v234
    %282 = vmatprep.subr.bf16.mxu0 0
    %283 = vmatpush1.bf16.msra.mxu0 %v235
    %284 = vmatprep.mubr.bf16.mxu0 %v91
    %285 = vmatmul.mubr.bf16.gmra.mrb[0].mxu0 %v79
    %v286 = vpop.f32.mrb[0].mxu0
    %v287 = vadd.f32 0.0, %v286
    %v288 = vpop.f32.mrb[0].mxu0
    %v289 = vpop.f32.mrb[0].mxu0
    %v290 = vpop.f32.mrb[0].mxu0
    %291 = vdwg.mxu0
    %v324 = vunpack.c.l.b16 %v92
    %v325 = vunpack.c.l.b16 %v93
    %v326 = vunpack.c.l.b16 %v94
    %v327 = vunpack.c.l.b16 %v95
    %v328 = vunpack.c.l.b16 %v96
    %v329 = vunpack.c.l.b16 %v97
    %v330 = vunpack.c.l.b16 %v98
    %v331 = vunpack.c.l.b16 %v99
    %v332 = vunpack.c.l.b16 %v100
    %v333 = vunpack.c.l.b16 %v101
    %v334 = vunpack.c.l.b16 %v102
    %v335 = vunpack.c.l.b16 %v103
    %v336 = vunpack.c.l.b16 %v104
    %v337 = vunpack.c.l.b16 %v105
    %v338 = vunpack.c.l.b16 %v106
    %v339 = vunpack.c.l.b16 %v107
    %v340 = vunpack.c.l.b16 %v108
    %v341 = vunpack.c.l.b16 %v109
    %v342 = vunpack.c.l.b16 %v110
    %v343 = vunpack.c.l.b16 %v111
    %v344 = vunpack.c.l.b16 %v112
    %v345 = vunpack.c.l.b16 %v113
    %v346 = vunpack.c.l.b16 %v114
    %v347 = vunpack.c.l.b16 %v115
    %v348 = vunpack.c.l.b16 %v116
    %v349 = vunpack.c.l.b16 %v117
    %v350 = vunpack.c.l.b16 %v118
    %v351 = vunpack.c.l.b16 %v119
    %v352 = vunpack.c.l.b16 %v120
    %v353 = vunpack.c.l.b16 %v121
    %v354 = vunpack.c.l.b16 %v122
    %v355 = vunpack.c.l.b16 %v123
    %v356 = vpack.c.b16 %v325, %v324
    %v357 = vpack.c.b16 %v327, %v326
    %v358 = vpack.c.b16 %v329, %v328
    %v359 = vpack.c.b16 %v331, %v330
    %v360 = vpack.c.b16 %v333, %v332
    %v361 = vpack.c.b16 %v335, %v334
    %v362 = vpack.c.b16 %v337, %v336
    %v363 = vpack.c.b16 %v339, %v338
    %v364 = vpack.c.b16 %v341, %v340
    %v365 = vpack.c.b16 %v343, %v342
    %v366 = vpack.c.b16 %v345, %v344
    %v367 = vpack.c.b16 %v347, %v346
    %v368 = vpack.c.b16 %v349, %v348
    %v369 = vpack.c.b16 %v351, %v350
    %v370 = vpack.c.b16 %v353, %v352
    %v371 = vpack.c.b16 %v355, %v354
    %388 = vmatprep.subr.bf16.mxu0 0
    %389 = vmatpush1.bf16.msra.mxu0 %v356
    %390 = vmatprep.subr.bf16.mxu0 0
    %391 = vmatpush1.bf16.msra.mxu0 %v357
    %392 = vmatprep.subr.bf16.mxu0 0
    %393 = vmatpush1.bf16.msra.mxu0 %v358
    %394 = vmatprep.subr.bf16.mxu0 0
    %395 = vmatpush1.bf16.msra.mxu0 %v359
    %396 = vmatprep.subr.bf16.mxu0 0
    %397 = vmatpush1.bf16.msra.mxu0 %v360
    %398 = vmatprep.subr.bf16.mxu0 0
    %399 = vmatpush1.bf16.msra.mxu0 %v361
    %400 = vmatprep.subr.bf16.mxu0 0
    %401 = vmatpush1.bf16.msra.mxu0 %v362
    %402 = vmatprep.subr.bf16.mxu0 0
    %403 = vmatpush1.bf16.msra.mxu0 %v363
    %404 = vmatprep.subr.bf16.mxu0 0
    %405 = vmatpush1.bf16.msra.mxu0 %v364
    %406 = vmatprep.subr.bf16.mxu0 0
    %407 = vmatpush1.bf16.msra.mxu0 %v365
    %408 = vmatprep.subr.bf16.mxu0 0
    %409 = vmatpush1.bf16.msra.mxu0 %v366
    %410 = vmatprep.subr.bf16.mxu0 0
    %411 = vmatpush1.bf16.msra.mxu0 %v367
    %412 = vmatprep.subr.bf16.mxu0 0
    %413 = vmatpush1.bf16.msra.mxu0 %v368
    %414 = vmatprep.subr.bf16.mxu0 0
    %415 = vmatpush1.bf16.msra.mxu0 %v369
    %416 = vmatprep.subr.bf16.mxu0 0
    %417 = vmatpush1.bf16.msra.mxu0 %v370
    %418 = vmatprep.subr.bf16.mxu0 0
    %419 = vmatpush1.bf16.msra.mxu0 %v371
    %420 = vmatprep.mubr.bf16.mxu0 %v91
    %421 = vmatmul.mubr.bf16.gmra.mrb[0].mxu0 %v79
    %v422 = vpop.f32.mrb[0].mxu0
    %v423 = vadd.f32 %v287, %v422
    %v424 = vpop.f32.mrb[0].mxu0
    %v425 = vpop.f32.mrb[0].mxu0
    %v426 = vpop.f32.mrb[0].mxu0
    %427 = vdwg.mxu0
    %v428 = vld [vmem:[#allocation5 + $0x100] sm:$0xf]
    %v429 = vld [vmem:[#allocation5 + $0x104] sm:$0xf]
    %v430 = vld [vmem:[#allocation5 + $0x108] sm:$0xf]
    %v431 = vld [vmem:[#allocation5 + $0x10c] sm:$0xf]
    %v432 = vld [vmem:[#allocation5 + $0x110] sm:$0xf]
    %v433 = vld [vmem:[#allocation5 + $0x114] sm:$0xf]
    %v434 = vld [vmem:[#allocation5 + $0x118] sm:$0xf]
    %v435 = vld [vmem:[#allocation5 + $0x11c] sm:$0xf]
    %v436 = vld [vmem:[#allocation5 + $0x120] sm:$0xf]
    %v437 = vld [vmem:[#allocation5 + $0x124] sm:$0xf]
    %v438 = vld [vmem:[#allocation5 + $0x128] sm:$0xf]
    %v439 = vld [vmem:[#allocation5 + $0x12c] sm:$0xf]
    %v440 = vld [vmem:[#allocation5 + $0x130] sm:$0xf]
    %v441 = vld [vmem:[#allocation5 + $0x134] sm:$0xf]
    %v442 = vld [vmem:[#allocation5 + $0x138] sm:$0xf]
    %v443 = vld [vmem:[#allocation5 + $0x13c] sm:$0xf]
    %v444 = vld [vmem:[#allocation5 + $0x140] sm:$0xf]
    %v445 = vld [vmem:[#allocation5 + $0x144] sm:$0xf]
    %v446 = vld [vmem:[#allocation5 + $0x148] sm:$0xf]
    %v447 = vld [vmem:[#allocation5 + $0x14c] sm:$0xf]
    %v448 = vld [vmem:[#allocation5 + $0x150] sm:$0xf]
    %v449 = vld [vmem:[#allocation5 + $0x154] sm:$0xf]
    %v450 = vld [vmem:[#allocation5 + $0x158] sm:$0xf]
    %v451 = vld [vmem:[#allocation5 + $0x15c] sm:$0xf]
    %v452 = vld [vmem:[#allocation5 + $0x160] sm:$0xf]
    %v453 = vld [vmem:[#allocation5 + $0x164] sm:$0xf]
    %v454 = vld [vmem:[#allocation5 + $0x168] sm:$0xf]
    %v455 = vld [vmem:[#allocation5 + $0x16c] sm:$0xf]
    %v456 = vld [vmem:[#allocation5 + $0x170] sm:$0xf]
    %v457 = vld [vmem:[#allocation5 + $0x174] sm:$0xf]
    %v458 = vld [vmem:[#allocation5 + $0x178] sm:$0xf]
    %v459 = vld [vmem:[#allocation5 + $0x17c] sm:$0xf]
    %v492 = vunpack.c.l.b16 %v428
    %v493 = vunpack.c.l.b16 %v429
    %v494 = vunpack.c.l.b16 %v430
    %v495 = vunpack.c.l.b16 %v431
    %v496 = vunpack.c.l.b16 %v432
    %v497 = vunpack.c.l.b16 %v433
    %v498 = vunpack.c.l.b16 %v434
    %v499 = vunpack.c.l.b16 %v435
    %v500 = vunpack.c.l.b16 %v436
    %v501 = vunpack.c.l.b16 %v437
    %v502 = vunpack.c.l.b16 %v438
    %v503 = vunpack.c.l.b16 %v439
    %v504 = vunpack.c.l.b16 %v440
    %v505 = vunpack.c.l.b16 %v441
    %v506 = vunpack.c.l.b16 %v442
    %v507 = vunpack.c.l.b16 %v443
    %v508 = vunpack.c.l.b16 %v444
    %v509 = vunpack.c.l.b16 %v445
    %v510 = vunpack.c.l.b16 %v446
    %v511 = vunpack.c.l.b16 %v447
    %v512 = vunpack.c.l.b16 %v448
    %v513 = vunpack.c.l.b16 %v449
    %v514 = vunpack.c.l.b16 %v450
    %v515 = vunpack.c.l.b16 %v451
    %v516 = vunpack.c.l.b16 %v452
    %v517 = vunpack.c.l.b16 %v453
    %v518 = vunpack.c.l.b16 %v454
    %v519 = vunpack.c.l.b16 %v455
    %v520 = vunpack.c.l.b16 %v456
    %v521 = vunpack.c.l.b16 %v457
    %v522 = vunpack.c.l.b16 %v458
    %v523 = vunpack.c.l.b16 %v459
    %v524 = vpack.c.b16 %v493, %v492
    %v525 = vpack.c.b16 %v495, %v494
    %v526 = vpack.c.b16 %v497, %v496
    %v527 = vpack.c.b16 %v499, %v498
    %v528 = vpack.c.b16 %v501, %v500
    %v529 = vpack.c.b16 %v503, %v502
    %v530 = vpack.c.b16 %v505, %v504
    %v531 = vpack.c.b16 %v507, %v506
    %v532 = vpack.c.b16 %v509, %v508
    %v533 = vpack.c.b16 %v511, %v510
    %v534 = vpack.c.b16 %v513, %v512
    %v535 = vpack.c.b16 %v515, %v514
    %v536 = vpack.c.b16 %v517, %v516
    %v537 = vpack.c.b16 %v519, %v518
    %v538 = vpack.c.b16 %v521, %v520
    %v539 = vpack.c.b16 %v523, %v522
    %556 = vmatprep.subr.bf16.mxu0 0
    %557 = vmatpush1.bf16.msra.mxu0 %v524
    %558 = vmatprep.subr.bf16.mxu0 0
    %559 = vmatpush1.bf16.msra.mxu0 %v525
    %560 = vmatprep.subr.bf16.mxu0 0
    %561 = vmatpush1.bf16.msra.mxu0 %v526
    %562 = vmatprep.subr.bf16.mxu0 0
    %563 = vmatpush1.bf16.msra.mxu0 %v527
    %564 = vmatprep.subr.bf16.mxu0 0
    %565 = vmatpush1.bf16.msra.mxu0 %v528
    %566 = vmatprep.subr.bf16.mxu0 0
    %567 = vmatpush1.bf16.msra.mxu0 %v529
    %568 = vmatprep.subr.bf16.mxu0 0
    %569 = vmatpush1.bf16.msra.mxu0 %v530
    %570 = vmatprep.subr.bf16.mxu0 0
    %571 = vmatpush1.bf16.msra.mxu0 %v531
    %572 = vmatprep.subr.bf16.mxu0 0
    %573 = vmatpush1.bf16.msra.mxu0 %v532
    %574 = vmatprep.subr.bf16.mxu0 0
    %575 = vmatpush1.bf16.msra.mxu0 %v533
    %576 = vmatprep.subr.bf16.mxu0 0
    %577 = vmatpush1.bf16.msra.mxu0 %v534
    %578 = vmatprep.subr.bf16.mxu0 0
    %579 = vmatpush1.bf16.msra.mxu0 %v535
    %580 = vmatprep.subr.bf16.mxu0 0
    %581 = vmatpush1.bf16.msra.mxu0 %v536
    %582 = vmatprep.subr.bf16.mxu0 0
    %583 = vmatpush1.bf16.msra.mxu0 %v537
    %584 = vmatprep.subr.bf16.mxu0 0
    %585 = vmatpush1.bf16.msra.mxu0 %v538
    %586 = vmatprep.subr.bf16.mxu0 0
    %587 = vmatpush1.bf16.msra.mxu0 %v539
    %588 = vmatprep.mubr.bf16.mxu0 %v91
    %589 = vmatmul.mubr.bf16.gmra.mrb[0].mxu0 %v79
    %v590 = vpop.f32.mrb[0].mxu0
    %v591 = vadd.f32 0.0, %v590
    %v592 = vpop.f32.mrb[0].mxu0
    %v593 = vpop.f32.mrb[0].mxu0
    %v594 = vpop.f32.mrb[0].mxu0
    %595 = vdwg.mxu0
    %v596 = vadd.f32 %v423, %v591
    %597 = vst [vmem:[#allocation7] sm:$0xff] %v596
    // Predicated region
    $region18: #{tpu_custom_call.1} parent=1 // pred_check
      _
    $region19: #{tpu_custom_call.1} parent=1 // pred_check_branch
      %599 = sbr.rel (0) target = $region21
    $region20: #{tpu_custom_call.1} parent=1 // pred_region
      %s601 = ssub.s32 128, 128
      %602 = vsyncadd [#allocation4], %s601
      %s604 = sshll.u32 [#allocation7], 4
      %s605 = int_to_ptr.vmem [resolvable:$true] %s604
      %607 = dma.vmem_to_hbm [thread:$0]  %s605, 128, %s2, [#allocation4]
    $region21: #{tpu_custom_call.1} parent=1 // pred_fallthru
      _
    // Predicated region
    $region22: #{tpu_custom_call.1} parent=1 // pred_check
      _
    $region23: #{tpu_custom_call.1} parent=1 // pred_check_branch
      %609 = sbr.rel (0) target = $region25
    $region24: #{tpu_custom_call.1} parent=1 // pred_region
      %610 = dma.done [#allocation4], 128
    $region25: #{tpu_custom_call.1} parent=1 // pred_fallthru
      _
    %611 = vsyncpa [#allocation3], 1
    %612 = vsyncpa [#allocation6], 1
    %613 = vsyncpa [#allocation4], 1

</llo_original>
